<compile_context>
chip_gen: v7x
topology: tpu7x:2x2x1
jax: 0.10.0
libtpu: 0.0.40
codegen_flags: <defaults>
</compile_context>

<pallas_src>
import jax
import jax.numpy as jnp
from jax.experimental import pallas as pl
from jax.experimental.pallas import tpu as pltpu


# ----------------------------------------------------------------------------
# Pallas kernel: out = spat (1, W) + dummy (R, W) * 0   (whole arrays in VMEM)
# ----------------------------------------------------------------------------
def _no_obj_spatial_kernel(dummy_ref, spat_ref, out_ref):
    # Keep the multiply-by-zero: it preserves torch's NaN/Inf -> NaN semantics
    # and the splat vmul co-issues with the vadd (VALU nowhere near saturated).
    zeroed = dummy_ref[...] * jnp.zeros((), dtype=dummy_ref.dtype)
    spat = spat_ref[...]
    # Trace-time dtype checks: no cast ops emitted in the all-f32 common case.
    if zeroed.dtype != out_ref.dtype:
        zeroed = zeroed.astype(out_ref.dtype)
    if spat.dtype != out_ref.dtype:
        spat = spat.astype(out_ref.dtype)
    # Broadcast (1, W) + (R, W) -> (R, W); gridless, so this broadcast is
    # emitted exactly once (no per-tile re-broadcast concern here).
    out_ref[...] = spat + zeroed


def _pallas_add_zeroed(dummy2d, spat2d, out_dtype, *, donate):
    """Gridless pallas_call for out = spat2d + dummy2d * 0 (whole-array VMEM)."""
    rows, width = dummy2d.shape
    out_dtype = jnp.dtype(out_dtype)

    # Advisory cost hint: ~1 mul + 1 add per element, pure memory traffic.
    cost = pl.CostEstimate(
        flops=2 * rows * width,
        transcendentals=0,
        bytes_accessed=int(
            dummy2d.size * dummy2d.dtype.itemsize
            + spat2d.size * spat2d.dtype.itemsize
            + rows * width * out_dtype.itemsize
        ),
    )

    extra_kwargs = {}
    # Donate dummy2d's buffer as the output when shapes/dtypes line up.
    if donate and dummy2d.dtype == out_dtype:
        extra_kwargs["input_output_aliases"] = {0: 0}

    return pl.pallas_call(
        _no_obj_spatial_kernel,
        out_shape=jax.ShapeDtypeStruct((rows, width), out_dtype),
        in_specs=[
            pl.BlockSpec(memory_space=pltpu.MemorySpace.VMEM),
            pl.BlockSpec(memory_space=pltpu.MemorySpace.VMEM),
        ],
        out_specs=pl.BlockSpec(memory_space=pltpu.MemorySpace.VMEM),
        cost_estimate=cost,
        **extra_kwargs,
    )(dummy2d, spat2d)


def no_obj_spatial_plus_zeroed_input(dummy_input, no_obj_embed_spatial,
                                     *, donate=True):
    """Compute no_obj_embed_spatial + dummy_input * 0 via a Pallas kernel.

    If donate=True and dtypes match, dummy_input's buffer may be reused for
    the output -- do not read dummy_input after this call in that case.
    """
    B, D = dummy_input.shape
    assert no_obj_embed_spatial.shape == (1, D)
    out_dtype = jnp.result_type(dummy_input.dtype, no_obj_embed_spatial.dtype)

    if D % 128 == 0:
        # Already lane-dense: pass through unchanged.
        return _pallas_add_zeroed(dummy_input, no_obj_embed_spatial, out_dtype,
                                  donate=donate)

    fold = 128 // D if (D < 128 and 128 % D == 0) else 0
    if fold and B % fold == 0:
        # Lane-dense repack: fold `fold` rows of width D into one 128-lane row.
        # (B=2, D=64) -> dummy (1, 128); the (1, D) parameter is tiled to
        # (1, 128) so each folded segment sees the same spatial row.
        dummy_lane = dummy_input.reshape(B // fold, 128)
        spat_lane = jnp.tile(no_obj_embed_spatial, (1, fold))
        out = _pallas_add_zeroed(dummy_lane, spat_lane, out_dtype,
                                 donate=donate)
        return out.reshape(B, D)

    # Fallback (non-foldable shapes): masked partial stores, still correct.
    return _pallas_add_zeroed(dummy_input, no_obj_embed_spatial, out_dtype,
                              donate=donate)


# ----------------------------------------------------------------------------
# SAM2Parameters equivalent
# ----------------------------------------------------------------------------
class SAM2ParametersJAX:
    """Holds the SAM2 'special' parameters and reproduces the forward pass."""

    def __init__(self, key, num_maskmem=7, hidden_dim=32, mem_dim=64):
        k0, k1, k2, k3, k4 = jax.random.split(key, 5)
        # Shapes follow SAM2Base.__init__:
        #   maskmem_tpos_enc     : (num_maskmem, 1, 1, mem_dim)
        #   no_mem_embed         : (1, 1, hidden_dim)
        #   no_mem_pos_enc       : (1, 1, hidden_dim)
        #   no_obj_ptr           : (1, hidden_dim)
        #   no_obj_embed_spatial : (1, mem_dim)
        self.maskmem_tpos_enc = jax.random.normal(
            k0, (num_maskmem, 1, 1, mem_dim), jnp.float32)
        self.no_mem_embed = jax.random.normal(k1, (1, 1, hidden_dim), jnp.float32)
        self.no_mem_pos_enc = jax.random.normal(k2, (1, 1, hidden_dim), jnp.float32)
        self.no_obj_ptr = jax.random.normal(k3, (1, hidden_dim), jnp.float32)
        self.no_obj_embed_spatial = jax.random.normal(k4, (1, mem_dim), jnp.float32)

    def forward(self, dummy_input, *, donate=True):
        # The four pass-through parameters are returned as-is (no compute);
        # only the broadcasted add with the zeroed dummy input runs in Pallas.
        fused = no_obj_spatial_plus_zeroed_input(
            dummy_input, self.no_obj_embed_spatial, donate=donate)
        return (self.maskmem_tpos_enc,
                self.no_mem_embed,
                self.no_mem_pos_enc,
                self.no_obj_ptr,
                fused)


if __name__ == "__main__":
    key = jax.random.PRNGKey(0)
    pkey, dkey = jax.random.split(key)

    mem_dim = 64
    batch = 2

    module = SAM2ParametersJAX(pkey, num_maskmem=7, hidden_dim=32, mem_dim=mem_dim)

    # dummy_input must be broadcast-compatible with no_obj_embed_spatial (1, mem_dim)
    dummy_input = jax.random.normal(dkey, (batch, mem_dim), jnp.float32)

    # Everything derived from dummy_input is computed BEFORE the (donating)
    # pallas_call so buffer donation stays safe.
    ref = module.no_obj_embed_spatial + dummy_input * 0
    dummy_nan = dummy_input.at[0, 0].set(jnp.nan)

    outs = jax.block_until_ready(module.forward(dummy_input))

    # Correctness check against plain-JAX reference of the torch semantics.
    assert outs[4].shape == (batch, mem_dim)
    assert outs[4].dtype == jnp.float32
    assert jnp.allclose(outs[4], ref, atol=1e-6), "mismatch vs reference"
    assert outs[0].shape == (7, 1, 1, mem_dim)
    assert outs[1].shape == (1, 1, 32)
    assert outs[2].shape == (1, 1, 32)
    assert outs[3].shape == (1, 32)

    # NaN propagation check (torch semantics: dummy * 0 keeps NaN -> NaN).
    out_nan = jax.block_until_ready(
        no_obj_spatial_plus_zeroed_input(dummy_nan, module.no_obj_embed_spatial))
    assert jnp.isnan(out_nan[0, 0]) and not jnp.isnan(out_nan[1, 0])

    # Exercise the non-foldable fallback path (D=32, B=2 cannot reach 128
    # lanes) with donation off, to cover the in-kernel broadcast branch.
    spat32 = jax.random.normal(jax.random.PRNGKey(1), (1, 32), jnp.float32)
    dummy32 = jax.random.normal(jax.random.PRNGKey(2), (2, 32), jnp.float32)
    out32 = jax.block_until_ready(
        no_obj_spatial_plus_zeroed_input(dummy32, spat32, donate=False))
    assert jnp.allclose(out32, spat32 + dummy32 * 0, atol=1e-6)

    print("KERNEL_OK")
</pallas_src>

<mosaic_0001>
module attributes {stable_mosaic.version = 11 : i64} {
  func.func @_no_obj_spatial_kernel(%arg0: memref<1x128xf32, #tpu.memory_space<vmem>>, %arg1: memref<1x128xf32, #tpu.memory_space<vmem>>, %arg2: memref<1x128xf32, #tpu.memory_space<vmem>>) attributes {dimension_semantics = [], scalar_prefetch = 0 : i64, scratch_operands = 0 : i64, tpu.core_type = #tpu.core_type<tc>} {
    %c0 = arith.constant 0 : index
    %c0_0 = arith.constant 0 : index
    %0 = vector.load %arg0[%c0, %c0_0] : memref<1x128xf32, #tpu.memory_space<vmem>>, vector<1x128xf32>
    %cst = arith.constant 0.000000e+00 : f32
    %1 = vector.broadcast %cst : f32 to vector<1x128xf32>
    %2 = arith.mulf %0, %1 : vector<1x128xf32>
    %c0_1 = arith.constant 0 : index
    %c0_2 = arith.constant 0 : index
    %3 = vector.load %arg1[%c0_1, %c0_2] : memref<1x128xf32, #tpu.memory_space<vmem>>, vector<1x128xf32>
    %4 = arith.addf %3, %2 : vector<1x128xf32>
    %c0_3 = arith.constant 0 : index
    %c0_4 = arith.constant 0 : index
    %5 = vector.load %arg2[%c0_3, %c0_4] : memref<1x128xf32, #tpu.memory_space<vmem>>, vector<1x128xf32>
    tpu.vector_store %arg2[%c0_3, %c0_4], %4 {strides = array<i32>} : memref<1x128xf32, #tpu.memory_space<vmem>>, vector<1x128xf32>,
    return
  }
}

</mosaic_0001>

<llo_original>
// kernel: tpu_custom_call.1
$region0: #{tpu_custom_call.1}
  #allocation0 [shape = 'u32[]', space=smem, size = 0x4, offset = 0x4, fixed_abs, tag = 'smem constant byte address 0x4 - core index']
  #allocation1 [shape = 'u32[144,128]{1,0:T(1,128)}', space=vmem, size = 0x12000, scoped, tag = 'internal scratch']
  %s0 = inlined_call_operand.hbm [shape: f32[1,128], index: 0, kind: input, shape index: {}, may-alias: {0,2}]
  %s1 = inlined_call_operand.vmem [shape: f32[1,128], index: 1, kind: input, shape index: {}]
  %s2 = inlined_call_operand.hbm [shape: f32[1,128], index: 2, kind: output, shape index: {}, may-alias: {0,2}]
  %s3 = sld [smem:[#allocation0]]
  $region22: #{tpu_custom_call.1} parent=0
    _
  %s5 = ssub.s32 1, %s3
  %s6 = scalar_select 0, %s5, %s3
  $region1: #{tpu_custom_call.1} parent=0
    #allocation2 [shape = 'u8[512]{0}', space=vmem, size = 0x400, scoped, tag = 'input window, operand 0, single buffered']
    #allocation3 [shape = 's32[1]{0}', space=sflag, size = 0x4, scoped, tag = 'scoped memory for tpu_custom_call.1']
    #allocation4 [shape = 's32[1]{0}', space=sflag, size = 0x4, scoped, tag = 'scoped memory for tpu_custom_call.1']
    #allocation5 [shape = 'u8[512]{0}', space=vmem, size = 0x400, scoped, tag = 'output window, operand 0, single buffered']
    %7 = vsyncpa [#allocation3], 0
    %8 = vsyncpa [#allocation4], 0
    // Predicated region
    $region2: #{tpu_custom_call.1} parent=1 // pred_check
      _
    $region3: #{tpu_custom_call.1} parent=1 // pred_check_branch
      %10 = sbr.rel (0) target = $region5
    $region4: #{tpu_custom_call.1} parent=1 // pred_region
      %s12 = ssub.s32 16, 16
      %13 = vsyncadd [#allocation3], %s12
      %s15 = sshll.u32 [#allocation2], 4
      %s16 = int_to_ptr.vmem [resolvable:$true] %s15
      %18 = dma.hbm_to_vmem [thread:$0]  %s0, 16, %s16, [#allocation3]
    $region5: #{tpu_custom_call.1} parent=1 // pred_fallthru
      _
    // Predicated region
    $region6: #{tpu_custom_call.1} parent=1 // pred_check
      _
    $region7: #{tpu_custom_call.1} parent=1 // pred_check_branch
      %20 = sbr.rel (0) target = $region9
    $region8: #{tpu_custom_call.1} parent=1 // pred_region
      _
    $region9: #{tpu_custom_call.1} parent=1 // pred_fallthru
      _
    // Predicated region
    $region10: #{tpu_custom_call.1} parent=1 // pred_check
      _
    $region11: #{tpu_custom_call.1} parent=1 // pred_check_branch
      %22 = sbr.rel (0) target = $region13
    $region12: #{tpu_custom_call.1} parent=1 // pred_region
      %23 = dma.done [#allocation3], 16
    $region13: #{tpu_custom_call.1} parent=1 // pred_fallthru
      _
    %v24 = vld [vmem:[#allocation2] sm:$0x1]
    %v25 = vmul.f32 %v24, 0.0
    %v26 = vld [vmem:[%s1] sm:$0x1]
    %v27 = vadd.f32 %v26, %v25
    %28 = vst [vmem:[#allocation5] sm:$0x1] %v27
    // Predicated region
    $region14: #{tpu_custom_call.1} parent=1 // pred_check
      _
    $region15: #{tpu_custom_call.1} parent=1 // pred_check_branch
      %30 = sbr.rel (0) target = $region17
    $region16: #{tpu_custom_call.1} parent=1 // pred_region
      %s32 = ssub.s32 16, 16
      %33 = vsyncadd [#allocation4], %s32
      %s35 = sshll.u32 [#allocation5], 4
      %s36 = int_to_ptr.vmem [resolvable:$true] %s35
      %38 = dma.vmem_to_hbm [thread:$0]  %s36, 16, %s2, [#allocation4]
    $region17: #{tpu_custom_call.1} parent=1 // pred_fallthru
      _
    // Predicated region
    $region18: #{tpu_custom_call.1} parent=1 // pred_check
      _
    $region19: #{tpu_custom_call.1} parent=1 // pred_check_branch
      %40 = sbr.rel (0) target = $region21
    $region20: #{tpu_custom_call.1} parent=1 // pred_region
      %41 = dma.done [#allocation4], 16
    $region21: #{tpu_custom_call.1} parent=1 // pred_fallthru
      _
    %42 = vsyncpa [#allocation3], 1
    %43 = vsyncpa [#allocation4], 1

</llo_original>
